<compile_context>
chip_gen: v7x
topology: tpu7x:2x2x1
jax: 0.10.0
libtpu: 0.0.40
codegen_flags: <defaults>
</compile_context>

<pallas_src>
import jax
import jax.numpy as jnp
from jax.experimental import pallas as pl
from jax.experimental.pallas import tpu as pltpu


def _final_zprjs_kernel(w_ref, bias_ref, x_ref, o_ref):
    b = pl.program_id(0)
    x = x_ref[0].astype(jnp.float32)      # (C, tn); upcast covers the bf16 input path
    w = w_ref[0]                          # (C, 1)  per-sample folded weight (f32)
    out = jnp.sum(x * w, axis=0, keepdims=True) + bias_ref[b]   # (1, tn)
    o_ref[0] = out.astype(o_ref.dtype)


def _device_budgets():
    """Per-generation (max_tn, vmem_budget_bytes, vmem_limit_bytes_or_None)."""
    kind = ""
    try:
        kind = jax.devices()[0].device_kind.lower()
    except Exception:
        pass
    if any(tag in kind for tag in ("v6", "v7", "7x")):
        # v6e / v7x: default scoped VMEM is 32 MiB -> allow bigger tiles and be
        # explicit about the limit.  Keep well under 32 MiB (v7x physical = 64 MiB).
        return 65536, 24 * 1024 * 1024, 32 * 1024 * 1024
    # v5e / older / unknown: default scoped VMEM is 16 MiB -> stay conservative.
    return 32768, 12 * 1024 * 1024, None


def _choose_tiling(N, C, x_bpe, max_tn, vmem_budget):
    """Pick a lane tile tn (multiple of 128) and the padded spatial size.

    Footprint model (double-buffered): x tile (C sublanes, x_bpe bytes/elem) +
    output tile whose single row pads to 8 sublanes of f32 in VMEM, plus slack
    for the tiny (1,C,1) weight block.
    """
    def footprint(t):
        return 2 * C * t * x_bpe + 2 * 8 * t * 4 + 256 * 1024

    def fits(t):
        return footprint(t) <= vmem_budget

    n_pad128 = ((N + 127) // 128) * 128

    # 1) Prefer an exact divisor of N that is a multiple of 128 (no padding).
    best_div = 0
    t = 128
    lim = min(max_tn, N)
    while t <= lim:
        if N % t == 0 and fits(t):
            best_div = t
        t += 128
    if best_div >= 2048 or best_div == N:
        return best_div, N

    # 2) Otherwise pad: largest power-of-two tile that fits the budget, shrunk
    #    while the padding waste is large (>1/16 of N and >1024 lanes).
    tn = 128
    while tn * 2 <= max_tn and fits(tn * 2):
        tn *= 2
    tn = min(tn, n_pad128)                 # tiny inputs -> one tile, no over-alloc
    while tn > 512:
        waste = (-(-N // tn)) * tn - N
        if waste * 16 <= N or waste <= 1024:
            break
        tn //= 2
    if best_div > tn:                      # the padding-free option was better
        return best_div, N
    n_padded = (-(-N // tn)) * tn
    return tn, n_padded


def final_zprjs_conv_layer(x, z_prjs, params, *, use_bf16_input=False):
    B, C, D, H, W = x.shape
    N = D * H * W

    # --- tiny per-sample embedding MLPs + algebraic fold (plain JAX, [B,5]) ---
    z_act = jax.nn.silu(z_prjs.astype(jnp.float32))
    hwd = (z_act @ params["hwd_w"].T + params["hwd_b"])[:, 0]        # (B,)
    c_embd = z_act @ params["c_w"].T + params["c_b"]                 # (B, 2)
    scale = c_embd[:, 0]
    shift = c_embd[:, 1]

    conv_w = params["conv_w"].reshape(C).astype(jnp.float32)         # (C,)
    conv_b = params["conv_b"].reshape(()).astype(jnp.float32)        # ()

    w_eff = (conv_w[None, :] + (hwd * scale)[:, None])[:, :, None]   # (B, C, 1) f32
    bias_eff = conv_b + shift                                        # (B,)   f32

    x_dtype = jnp.bfloat16 if use_bf16_input else x.dtype
    x_flat = x.reshape(B, C, N).astype(x_dtype)
    x_bpe = jnp.dtype(x_dtype).itemsize

    max_tn, vmem_budget, vmem_limit = _device_budgets()
    tn, n_padded = _choose_tiling(N, C, x_bpe, max_tn, vmem_budget)
    if n_padded != N:
        x_flat = jnp.pad(x_flat, ((0, 0), (0, 0), (0, n_padded - N)))

    grid = (B, n_padded // tn)

    cost = pl.CostEstimate(
        flops=2 * B * C * n_padded,
        transcendentals=0,
        bytes_accessed=B * n_padded * (C * x_bpe + 4),
    )

    compiler_kwargs = dict(dimension_semantics=("parallel", "parallel"))
    if vmem_limit is not None:
        compiler_kwargs["vmem_limit_bytes"] = vmem_limit

    out = pl.pallas_call(
        _final_zprjs_kernel,
        out_shape=jax.ShapeDtypeStruct((B, 1, n_padded), x.dtype),
        grid_spec=pltpu.PrefetchScalarGridSpec(
            num_scalar_prefetch=0,
            grid=grid,
            in_specs=[
                pl.BlockSpec((1, C, 1), lambda b, n: (b, 0, 0)),          # w_eff (VMEM)
                pl.BlockSpec(memory_space=pltpu.MemorySpace.SMEM),        # bias_eff (B,)
                pl.BlockSpec((1, C, tn), lambda b, n: (b, 0, n)),         # x tile
            ],
            out_specs=pl.BlockSpec((1, 1, tn), lambda b, n: (b, 0, n)),
        ),
        compiler_params=pltpu.CompilerParams(**compiler_kwargs),
        cost_estimate=cost,
    )(w_eff, bias_eff, x_flat)

    if n_padded != N:
        out = out[:, :, :N]
    return out.reshape(B, 1, D, H, W)


def reference(x, z_prjs, params):
    B, C, D, H, W = x.shape
    z_act = jax.nn.silu(z_prjs.astype(jnp.float32))
    hwd_w = (z_act @ params["hwd_w"].T + params["hwd_b"])[:, 0]
    c_embd = z_act @ params["c_w"].T + params["c_b"]
    scale = c_embd[:, 0][:, None, None, None, None]
    shift = c_embd[:, 1][:, None, None, None, None]
    conv_w = params["conv_w"].reshape(1, C, 1, 1, 1)
    x_conv = jnp.sum(x * conv_w, axis=1, keepdims=True) + params["conv_b"].reshape(1, 1, 1, 1, 1)
    hwd = hwd_w[:, None, None, None, None] * jnp.sum(x, axis=1, keepdims=True)
    return x_conv + hwd * scale + shift


if __name__ == "__main__":
    key = jax.random.PRNGKey(0)
    k_x, k_z, k1, k2, k3, k4, k5, k6, k_x2 = jax.random.split(key, 9)

    B, C = 2, 16
    params = {
        # FinalHWD_Embedding_Layer: Linear(5, 1)
        "hwd_w": jax.random.normal(k1, (1, 5), dtype=jnp.float32) * 0.1,
        "hwd_b": jax.random.normal(k2, (1,), dtype=jnp.float32) * 0.1,
        # FinalC_Embeding_Layer: Linear(5, 2)
        "c_w": jax.random.normal(k3, (2, 5), dtype=jnp.float32) * 0.1,
        "c_b": jax.random.normal(k4, (2,), dtype=jnp.float32) * 0.1,
        # FinalConv: Conv3d(16, 1, kernel_size=1)
        "conv_w": jax.random.normal(k5, (1, C, 1, 1, 1), dtype=jnp.float32) * 0.1,
        "conv_b": jax.random.normal(k6, (1,), dtype=jnp.float32) * 0.1,
    }
    z_prjs = jax.random.normal(k_z, (B, 5), dtype=jnp.float32)

    # Case 1: 128-divisible spatial size, f32 path (tight tolerance vs reference).
    x = jax.random.normal(k_x, (B, C, 8, 8, 8), dtype=jnp.float32)
    out = jax.block_until_ready(final_zprjs_conv_layer(x, z_prjs, params))
    ref = jax.block_until_ready(reference(x, z_prjs, params))
    assert out.shape == (B, 1, 8, 8, 8)
    assert jnp.allclose(out, ref, rtol=1e-4, atol=1e-4), "f32 path mismatch vs reference"

    # Case 2: non-128-divisible spatial size (5*6*7=210) exercises the padding path.
    x2 = jax.random.normal(k_x2, (B, C, 5, 6, 7), dtype=jnp.float32)
    out2 = jax.block_until_ready(final_zprjs_conv_layer(x2, z_prjs, params))
    ref2 = jax.block_until_ready(reference(x2, z_prjs, params))
    assert out2.shape == (B, 1, 5, 6, 7)
    assert jnp.allclose(out2, ref2, rtol=1e-4, atol=1e-4), "padded path mismatch vs reference"

    # Case 3: optional bf16-input path (halves HBM read traffic; looser tolerance).
    out_bf16 = jax.block_until_ready(
        final_zprjs_conv_layer(x, z_prjs, params, use_bf16_input=True))
    assert jnp.allclose(out_bf16, ref, rtol=2e-2, atol=2e-2), "bf16 path mismatch vs reference"

    print("KERNEL_OK")
</pallas_src>

<mosaic_0001>
module attributes {stable_mosaic.version = 11 : i64} {
  func.func @_final_zprjs_kernel(%arg0: i32, %arg1: i32, %arg2: memref<1x16x1xf32, #tpu.memory_space<vmem>>, %arg3: memref<2xf32, #tpu.memory_space<smem>>, %arg4: memref<1x16x512xf32, #tpu.memory_space<vmem>>, %arg5: memref<1x1x512xf32, #tpu.memory_space<vmem>>) attributes {dimension_semantics = [#tpu.dimension_semantics<parallel>, #tpu.dimension_semantics<parallel>], iteration_bounds = array<i64: 2, 1>, scalar_prefetch = 0 : i64, scratch_operands = 0 : i64, tpu.core_type = #tpu.core_type<tc>, window_params = [{transform_indices = @transform_0, window_bounds = array<i64: 1, 16, 1>}, {transform_indices = @transform_1, window_bounds = array<i64: 2>}, {transform_indices = @transform_2, window_bounds = array<i64: 1, 16, 512>}, {transform_indices = @transform_3, window_bounds = array<i64: 1, 1, 512>}]} {
    %c0 = arith.constant 0 : index
    %c0_0 = arith.constant 0 : index
    %c0_1 = arith.constant 0 : index
    %0 = vector.load %arg4[%c0, %c0_0, %c0_1] : memref<1x16x512xf32, #tpu.memory_space<vmem>>, vector<1x16x512xf32>
    %1 = vector.shape_cast %0 : vector<1x16x512xf32> to vector<16x512xf32>
    %c0_2 = arith.constant 0 : index
    %c0_3 = arith.constant 0 : index
    %c0_4 = arith.constant 0 : index
    %2 = vector.load %arg2[%c0_2, %c0_3, %c0_4] : memref<1x16x1xf32, #tpu.memory_space<vmem>>, vector<1x16x1xf32>
    %3 = vector.shape_cast %2 : vector<1x16x1xf32> to vector<16x1xf32>
    %4 = vector.broadcast %3 : vector<16x1xf32> to vector<16x512xf32>
    %5 = arith.mulf %1, %4 : vector<16x512xf32>
    %cst = arith.constant dense<0.000000e+00> : vector<512xf32>
    %6 = vector.multi_reduction <add>, %5, %cst [0] : vector<16x512xf32> to vector<512xf32>
    %7 = vector.shape_cast %6 : vector<512xf32> to vector<1x512xf32>
    %8 = arith.index_cast %arg0 : i32 to index
    %9 = memref.load %arg3[%8] : memref<2xf32, #tpu.memory_space<smem>>
    %10 = vector.broadcast %9 : f32 to vector<1x512xf32>
    %11 = arith.addf %7, %10 : vector<1x512xf32>
    %c0_5 = arith.constant 0 : index
    %c0_6 = arith.constant 0 : index
    %c0_7 = arith.constant 0 : index
    %12 = vector.load %arg5[%c0_5, %c0_6, %c0_7] : memref<1x1x512xf32, #tpu.memory_space<vmem>>, vector<1x1x512xf32>
    %13 = vector.shape_cast %12 : vector<1x1x512xf32> to vector<1x512xf32>
    %14 = vector.shape_cast %11 : vector<1x512xf32> to vector<1x1x512xf32>
    tpu.vector_store %arg5[%c0_5, %c0_6, %c0_7], %14 {strides = array<i32>} : memref<1x1x512xf32, #tpu.memory_space<vmem>>, vector<1x1x512xf32>,
    return
  }
  func.func @transform_0(%arg0: i32, %arg1: i32) -> (i32, i32, i32) {
    %c0_i32 = arith.constant 0 : i32
    %c0_i32_0 = arith.constant 0 : i32
    %c0_i32_1 = arith.constant 0 : i32
    return %arg0, %c0_i32, %c0_i32_0 : i32, i32, i32
  }
  func.func @transform_1(%arg0: i32, %arg1: i32) -> i32 {
    %c0_i32 = arith.constant 0 : i32
    %c0_i32_0 = arith.constant 0 : i32
    return %c0_i32 : i32
  }
  func.func @transform_2(%arg0: i32, %arg1: i32) -> (i32, i32, i32) {
    %c0_i32 = arith.constant 0 : i32
    %c0_i32_0 = arith.constant 0 : i32
    return %arg0, %c0_i32, %arg1 : i32, i32, i32
  }
  func.func @transform_3(%arg0: i32, %arg1: i32) -> (i32, i32, i32) {
    %c0_i32 = arith.constant 0 : i32
    %c0_i32_0 = arith.constant 0 : i32
    return %arg0, %c0_i32, %arg1 : i32, i32, i32
  }
}

</mosaic_0001>

<llo_original>
// kernel: tpu_custom_call.1
$region0: #{tpu_custom_call.1}
  #allocation0 [shape = 'u32[]', space=smem, size = 0x4, offset = 0x4, fixed_abs, tag = 'smem constant byte address 0x4 - core index']
  #allocation1 [shape = 'u32[144,128]{1,0:T(1,128)}', space=vmem, size = 0x12000, scoped, tag = 'internal scratch']
  %s0 = inlined_call_operand.vmem [shape: f32[2,16,1], index: 0, kind: input, shape index: {}]
  %s1 = inlined_call_operand.vmem [shape: f32[2], index: 1, kind: input, shape index: {}]
  %s2 = inlined_call_operand.hbm [shape: f32[2,16,512], index: 2, kind: input, shape index: {}]
  %s3 = inlined_call_operand.hbm [shape: f32[2,1,512], index: 3, kind: output, shape index: {}]
  %s4 = sld [smem:[#allocation0]]
  $region53: #{tpu_custom_call.1} parent=0
    _
  %s6 = ssub.s32 1, %s4
  %s7 = scalar_select 0, %s6, %s4
  $region1: #{tpu_custom_call.1} parent=0
    #allocation2 [shape = 'u8[512]{0}', space=smem, size = 0x200, scoped, tag = 'input window, operand 1, single buffered']
    #allocation3 [shape = 's32[2]{0}', space=sflag, size = 0x8, scoped, tag = 'scoped memory for tpu_custom_call.1']
    #allocation4 [shape = 's32[2]{0}', space=sflag, size = 0x8, scoped, tag = 'scoped memory for tpu_custom_call.1']
    #allocation5 [shape = 's32[2]{0}', space=sflag, size = 0x8, scoped, tag = 'scoped memory for tpu_custom_call.1']
    #allocation6 [shape = 'u8[65536]{0}', space=vmem, size = 0x10000, scoped, tag = 'input window, operand 2']
    #allocation7 [shape = 'u8[4096]{0}', space=vmem, size = 0x1000, scoped, tag = 'output window, operand 0']
    %8 = vsyncpa [#allocation5], 0
    %9 = vsyncpa [#allocation3], 0
    %s10 = scalar_lea.sflag [#allocation3], 1
    %11 = vsyncpa %s10, 0
    %12 = vsyncpa [#allocation4], 0
    %s13 = scalar_lea.sflag [#allocation4], 1
    %14 = vsyncpa %s13, 0
    loop: start=0, step=1, limit=4
    $region2: #{tpu_custom_call.1} parent=1 // loop_pre_header
      _
    $region3: #{tpu_custom_call.1} parent=1 // loop_header
      %s16 = sphi 0, %s20
      %p17 = scmp.ge.s32.totalorder %s16, 4
      %s23 = sphi 0, %s35
      %s24 = sphi 0, %s31
      %s25 = sphi 0, %s23
      %s26 = sphi 0, %s24
      %s27 = sphi 0, %s25
      %s28 = sphi 0, %s26
      %s38 = sphi 0, %s40
      %s41 = sphi 0, %s38
      %s42 = sphi 0, %s41
      %s58 = sphi 0, %s42
      %s62 = sphi 0, %s62
      %s64 = sphi 0, %s62
      %s65 = sphi 0, %s64
      %s79 = sphi 0, %s65
      %s87 = sphi 0, %s89
      %s90 = sphi 0, %s87
      %s91 = sphi 0, %s90
      %s107 = sphi 0, %s91
      %s115 = sphi 0, %s117
      %s118 = sphi 0, %s115
      %s119 = sphi 0, %s118
      %s135 = sphi 0, %s119
    $region4: #{tpu_custom_call.1} parent=1 // loop_header_branch
      %19 = sbr.rel (%p17) target = $region8
    $region5: #{tpu_custom_call.1} parent=1 // loop_body
      %s21 = ssub.s32 %s16, 1
      %s22 = ssub.s32 %s16, 2
      %s29 = sadd.s32 1, %s24
      %p30 = scmp.ge.s32.totalorder %s29, 1
      %s31 = scalar_select %p30, 0, %s29
      %s32 = sadd.s32 1, %s23
      %s33 = scalar_select %p30, %s32, %s23
      %p34 = scmp.ge.s32.totalorder %s33, 2
      %s35 = scalar_select %p34, 0, %s33
      %s36 = ssub.s32 %s23, %s35
      %p37 = scmp.eq.s32.totalorder %s36, 0
      %s39 = sadd.s32 %s38, 1
      %s40 = scalar_select %p37, %s38, %s39
      %p43 = pneg %p37
      %p44 = scmp.eq.s32.totalorder %s16, 1
      %p45 = por %p43, %p44
      %p46 = scmp.ne.s32.totalorder %s38, %s41
      %p47 = scmp.eq.s32.totalorder %s16, 0
      %p48 = por %p46, %p47
      %p49 = scmp.ne.s32.totalorder %s38, %s41
      %p50 = scmp.eq.s32.totalorder %s21, 1
      %p51 = por %p49, %p50
      %p52 = scmp.ne.s32.totalorder %s41, %s42
      %p53 = scmp.eq.s32.totalorder %s21, 0
      %p54 = por %p52, %p53
      %p55 = scmp.ne.s32.totalorder %s41, %s42
      %p56 = scmp.eq.s32.totalorder %s22, 1
      %p57 = por %p55, %p56
      %p59 = scmp.ne.s32.totalorder %s42, %s58
      %p60 = scmp.eq.s32.totalorder %s22, 0
      %p61 = por %p59, %p60
      %s63 = sadd.s32 %s62, 1
      %p66 = scmp.eq.s32.totalorder %s16, 1
      %p67 = scmp.ne.s32.totalorder %s62, %s64
      %p68 = scmp.eq.s32.totalorder %s16, 0
      %p69 = por %p67, %p68
      %p70 = scmp.ne.s32.totalorder %s62, %s64
      %p71 = scmp.eq.s32.totalorder %s21, 1
      %p72 = por %p70, %p71
      %p73 = scmp.ne.s32.totalorder %s64, %s65
      %p74 = scmp.eq.s32.totalorder %s21, 0
      %p75 = por %p73, %p74
      %p76 = scmp.ne.s32.totalorder %s64, %s65
      %p77 = scmp.eq.s32.totalorder %s22, 1
      %p78 = por %p76, %p77
      %p80 = scmp.ne.s32.totalorder %s65, %s79
      %p81 = scmp.eq.s32.totalorder %s22, 0
      %p82 = por %p80, %p81
      %s83 = ssub.s32 %s23, %s35
      %s84 = ssub.s32 %s24, %s31
      %s85 = sor.u32 %s83, %s84
      %p86 = scmp.eq.s32.totalorder %s85, 0
      %s88 = sadd.s32 %s87, 1
      %s89 = scalar_select %p86, %s87, %s88
      %p92 = pneg %p86
      %p93 = scmp.eq.s32.totalorder %s16, 1
      %p94 = por %p92, %p93
      %p95 = scmp.ne.s32.totalorder %s87, %s90
      %p96 = scmp.eq.s32.totalorder %s16, 0
      %p97 = por %p95, %p96
      %p98 = scmp.ne.s32.totalorder %s87, %s90
      %p99 = scmp.eq.s32.totalorder %s21, 1
      %p100 = por %p98, %p99
      %p101 = scmp.ne.s32.totalorder %s90, %s91
      %p102 = scmp.eq.s32.totalorder %s21, 0
      %p103 = por %p101, %p102
      %p104 = scmp.ne.s32.totalorder %s90, %s91
      %p105 = scmp.eq.s32.totalorder %s22, 1
      %p106 = por %p104, %p105
      %p108 = scmp.ne.s32.totalorder %s91, %s107
      %p109 = scmp.eq.s32.totalorder %s22, 0
      %p110 = por %p108, %p109
      %s111 = ssub.s32 %s23, %s35
      %s112 = ssub.s32 %s24, %s31
      %s113 = sor.u32 %s111, %s112
      %p114 = scmp.eq.s32.totalorder %s113, 0
      %s116 = sadd.s32 %s115, 1
      %s117 = scalar_select %p114, %s115, %s116
      %p120 = pneg %p114
      %p121 = scmp.eq.s32.totalorder %s16, 1
      %p122 = por %p120, %p121
      %p123 = scmp.ne.s32.totalorder %s115, %s118
      %p124 = scmp.eq.s32.totalorder %s16, 0
      %p125 = por %p123, %p124
      %p126 = scmp.ne.s32.totalorder %s115, %s118
      %p127 = scmp.eq.s32.totalorder %s21, 1
      %p128 = por %p126, %p127
      %p129 = scmp.ne.s32.totalorder %s118, %s119
      %p130 = scmp.eq.s32.totalorder %s21, 0
      %p131 = por %p129, %p130
      %p132 = scmp.ne.s32.totalorder %s118, %s119
      %p133 = scmp.eq.s32.totalorder %s22, 1
      %p134 = por %p132, %p133
      %p136 = scmp.ne.s32.totalorder %s119, %s135
      %p137 = scmp.eq.s32.totalorder %s22, 0
      %p138 = por %p136, %p137
      %p139 = scmp.le.s32.totalorder 1, %s16
      %p140 = scmp.lt.s32.totalorder %s16, 3
      %p141 = pnand %p139, %p140
      %p142 = pneg %p141
      // Predicated region
      $region9: #{tpu_custom_call.1} parent=5 // pred_check
        _
      $region10: #{tpu_custom_call.1} parent=5 // pred_check_branch
        %144 = sbr.rel (%p141) target = $region12
      $region11: #{tpu_custom_call.1} parent=5 // pred_region
        %s145 = ssub.s32 %s16, 1
        // Predicated region
        $region13: #{tpu_custom_call.1} parent=11 // pred_check
          %p146 = pneg %p75
        $region14: #{tpu_custom_call.1} parent=11 // pred_check_branch
          %148 = sbr.rel (%p146) target = $region16
        $region15: #{tpu_custom_call.1} parent=11 // pred_region
          %s150 = ssub.s32 16, 16
          %151 = vsyncadd [#allocation5], %s150
          %s153 = sshll.u32 %s1, 4
          %s154 = int_to_ptr.vmem [resolvable:$true] %s153
          %156 = dma.vmem_to_smem %s154, 16, [#allocation2], [#allocation5]
        $region16: #{tpu_custom_call.1} parent=11 // pred_fallthru
          _
      $region12: #{tpu_custom_call.1} parent=5 // pred_fallthru
        _
      %p157 = scmp.lt.s32.totalorder %s16, 2
      // Predicated region
      $region17: #{tpu_custom_call.1} parent=5 // pred_check
        %p158 = pneg %p157
      $region18: #{tpu_custom_call.1} parent=5 // pred_check_branch
        %160 = sbr.rel (%p158) target = $region20
      $region19: #{tpu_custom_call.1} parent=5 // pred_region
        // Predicated region
        $region21: #{tpu_custom_call.1} parent=19 // pred_check
          %p161 = pneg %p48
        $region22: #{tpu_custom_call.1} parent=19 // pred_check_branch
          %163 = sbr.rel (%p161) target = $region24
        $region23: #{tpu_custom_call.1} parent=19 // pred_region
          %p164 = scmp.lt.s32.totalorder %s23, 1
          %s165 = scalar_select %p164, %s23, 1
          %s166 = smul.addr %s165, 2
          %s167 = smul.addr %s166, 8
          %s168 = scalar_lea.vmem %s0, %s167
        $region24: #{tpu_custom_call.1} parent=19 // pred_fallthru
          _
        // Predicated region
        $region25: #{tpu_custom_call.1} parent=19 // pred_check
          %p169 = pneg %p97
        $region26: #{tpu_custom_call.1} parent=19 // pred_check_branch
          %171 = sbr.rel (%p169) target = $region28
        $region27: #{tpu_custom_call.1} parent=19 // pred_region
          %s172 = sand.u32 %s87, 1
          %s173 = scalar_lea.sflag [#allocation3], %s172
          %s174 = sand.u32 %s87, 1
          %s175 = smul.addr %s174, 64
          %s176 = scalar_lea.vmem [#allocation6], %s175
          %s177 = smul.u32 4, %s24
          %s179 = ssub.s32 1024, 1024
          %180 = vsyncadd %s173, %s179
          %s181 = smul.addr %s23, 8
          %s182 = sadd.s32 %s177, %s181
          %s183 = smul.addr %s182, 128
          %s184 = scalar_lea.hbm %s2, %s183
          %s185 = sshll.u32 %s176, 4
          %s186 = int_to_ptr.vmem [resolvable:$true] %s185
          %191 = dma.hbm_to_vmem [thread:$0]  %s184, 1024, %s186, %s173, 512, 512, 32
        $region28: #{tpu_custom_call.1} parent=19 // pred_fallthru
          _
      $region20: #{tpu_custom_call.1} parent=5 // pred_fallthru
        _
      %p192 = scmp.le.s32.totalorder 1, %s16
      %p193 = scmp.lt.s32.totalorder %s16, 3
      %p194 = pnand %p192, %p193
      %p195 = pneg %p194
      // Predicated region
      $region29: #{tpu_custom_call.1} parent=5 // pred_check
        _
      $region30: #{tpu_custom_call.1} parent=5 // pred_check_branch
        %197 = sbr.rel (%p194) target = $region32
      $region31: #{tpu_custom_call.1} parent=5 // pred_region
        %s198 = ssub.s32 %s16, 1
        // Predicated region
        $region33: #{tpu_custom_call.1} parent=31 // pred_check
          %p199 = pneg %p75
        $region34: #{tpu_custom_call.1} parent=31 // pred_check_branch
          %201 = sbr.rel (%p199) target = $region36
        $region35: #{tpu_custom_call.1} parent=31 // pred_region
          %202 = dma.done [#allocation5], 16
        $region36: #{tpu_custom_call.1} parent=31 // pred_fallthru
          _
        %s203 = sand.u32 %s90, 1
        %s204 = scalar_lea.sflag [#allocation3], %s203
        %s205 = sand.u32 %s90, 1
        %s206 = smul.addr %s205, 64
        %s207 = scalar_lea.vmem [#allocation6], %s206
        // Predicated region
        $region37: #{tpu_custom_call.1} parent=31 // pred_check
          %p208 = pneg %p103
        $region38: #{tpu_custom_call.1} parent=31 // pred_check_branch
          %210 = sbr.rel (%p208) target = $region40
        $region39: #{tpu_custom_call.1} parent=31 // pred_region
          %211 = dma.done %s204, 1024
        $region40: #{tpu_custom_call.1} parent=31 // pred_fallthru
          _
        %212 = sfence
        %p213 = scmp.lt.s32.totalorder %s25, 1
        %s214 = scalar_select %p213, %s25, 1
        %s215 = smul.addr %s214, 2
        %s216 = smul.addr %s215, 8
        %s217 = scalar_lea.vmem %s0, %s216
        %p218 = pneg %p54
        %p219 = pneg %p51
        %p220 = pneg %p75
        %p221 = pneg %p72
        %s222 = sand.u32 %s90, 1
        %s223 = scalar_lea.sflag [#allocation3], %s222
        %s224 = sand.u32 %s90, 1
        %s225 = smul.addr %s224, 64
        %s226 = scalar_lea.vmem [#allocation6], %s225
        %p227 = pneg %p103
        %p228 = pneg %p100
        %p229 = pneg %p131
        %p230 = pneg %p128
        %s231 = sand.u32 %s118, 1
        %s232 = scalar_lea.sflag [#allocation4], %s231
        %s233 = sand.u32 %s118, 1
        %s234 = smul.addr %s233, 4
        %s235 = scalar_lea.vmem [#allocation7], %s234
        %p236 = scmp.lt.s32.totalorder %s25, 1
        %s237 = scalar_select %p236, %s25, 1
        %s238 = smul.addr %s237, 2
        %s239 = smul.addr %s238, 8
        %s240 = scalar_lea.vmem %s0, %s239
        %s241 = smul.u32 4, %s26
        %s242 = smul.u32 4, %s26
        %v243 = vld [vmem:[%s207] sm:$0xff]
        %v244 = vld [vmem:[%s207 + $0x8] sm:$0xff]
        %v245 = vld [vmem:[%s207 + $0x10] sm:$0xff]
        %v246 = vld [vmem:[%s207 + $0x18] sm:$0xff]
        %v247 = vld [vmem:[%s207 + $0x20] sm:$0xff]
        %v248 = vld [vmem:[%s207 + $0x28] sm:$0xff]
        %v249 = vld [vmem:[%s207 + $0x30] sm:$0xff]
        %v250 = vld [vmem:[%s207 + $0x38] sm:$0xff]
        %v251 = vld [vmem:[%s240] sm:$0xff]
        %v252 = vld [vmem:[%s240 + $0x8] sm:$0xff]
        %254 = vset.pattern.permute.xlu0 0
        %255 = vperm.xlu0 %254, %v251
        %v256 = vpop.permute.xlu0 %255
        %259 = vset.pattern.permute.xlu0 0
        %260 = vperm.xlu0 %259, %v252
        %v261 = vpop.permute.xlu0 %260
        %v263 = vmul.f32 %v243, %v256
        %v264 = vmul.f32 %v244, %v256
        %v265 = vmul.f32 %v245, %v256
        %v266 = vmul.f32 %v246, %v256
        %v267 = vmul.f32 %v247, %v261
        %v268 = vmul.f32 %v248, %v261
        %v269 = vmul.f32 %v249, %v261
        %v270 = vmul.f32 %v250, %v261
        %v271 = vadd.f32 %v263, %v267
        %v272 = vrot.slane %v271, 4
        %v273 = vadd.f32 %v271, %v272
        %v274 = vrot.slane %v273, 2
        %v275 = vadd.f32 %v273, %v274
        %v276 = vrot.slane %v275, 1
        %v277 = vadd.f32 %v275, %v276
        %v278 = vadd.f32 %v264, %v268
        %v279 = vrot.slane %v278, 4
        %v280 = vadd.f32 %v278, %v279
        %v281 = vrot.slane %v280, 2
        %v282 = vadd.f32 %v280, %v281
        %v283 = vrot.slane %v282, 1
        %v284 = vadd.f32 %v282, %v283
        %v285 = vadd.f32 %v265, %v269
        %v286 = vrot.slane %v285, 4
        %v287 = vadd.f32 %v285, %v286
        %v288 = vrot.slane %v287, 2
        %v289 = vadd.f32 %v287, %v288
        %v290 = vrot.slane %v289, 1
        %v291 = vadd.f32 %v289, %v290
        %v292 = vadd.f32 %v266, %v270
        %v293 = vrot.slane %v292, 4
        %v294 = vadd.f32 %v292, %v293
        %v295 = vrot.slane %v294, 2
        %v296 = vadd.f32 %v294, %v295
        %v297 = vrot.slane %v296, 1
        %v298 = vadd.f32 %v296, %v297
        %s299 = sld [smem:[#allocation2 + %s25]]
        %v300 = vstv %s299
        %v301 = vadd.f32 %v277, %v300
        %v302 = vadd.f32 %v284, %v300
        %v303 = vadd.f32 %v291, %v300
        %v304 = vadd.f32 %v298, %v300
        %v309 = vcombine.low %v301, %v302
        %v310 = vcombine.low %v303, %v304
        %v312 = vunpack.c.l.s4 1966171168
        %v313 = vunpack.c.0.s8 %v312
        %v314 = vlaneseq
        %v315 = vshrl.u32 %v314, 7
        %v316 = vsub.s32 %v313, %v315
        %v317 = vrot.slane %v309, %v316
        %v319 = vunpack.c.l.s4 1966171168
        %v320 = vunpack.c.0.s8 %v319
        %v321 = vlaneseq
        %v322 = vshrl.u32 %v321, 7
        %v323 = vsub.s32 %v320, %v322
        %v324 = vrot.slane %v310, %v323
        %v325 = vcombine.low %v317, %v324
        %v327 = vunpack.c.l.s4 1966171168
        %v328 = vunpack.c.0.s8 %v327
        %v329 = vlaneseq
        %v330 = vshrl.u32 %v329, 7
        %v331 = vsub.s32 %v328, %v330
        %v332 = vrot.slane %v325, %v331
        %v334 = vlaneseq
        %vm335 = vcmp.ge.s32.totalorder %v334, 0
        %vm336 = vcmp.lt.s32.totalorder %v334, 512
        %vm337 = vmand %vm335, %vm336
        %338 = vst.msk [vmem:[%s235] sm:$0xf] %vm337, %v332
        %s339 = sand.u32 %s118, 1
        %s340 = scalar_lea.sflag [#allocation4], %s339
        %s341 = sand.u32 %s118, 1
        %s342 = smul.addr %s341, 4
        %s343 = scalar_lea.vmem [#allocation7], %s342
        // Predicated region
        $region41: #{tpu_custom_call.1} parent=31 // pred_check
          %p344 = pneg %p128
        $region42: #{tpu_custom_call.1} parent=31 // pred_check_branch
          %346 = sbr.rel (%p344) target = $region44
        $region43: #{tpu_custom_call.1} parent=31 // pred_region
          %s347 = smul.u32 4, %s26
          %s349 = ssub.s32 64, 64
          %350 = vsyncadd %s340, %s349
          %s351 = smul.addr %s25, 4
          %s352 = sadd.s32 %s347, %s351
          %s353 = smul.addr %s352, 16
          %s354 = scalar_lea.hbm %s3, %s353
          %s356 = sshll.u32 %s343, 4
          %s357 = int_to_ptr.vmem [resolvable:$true] %s356
          %359 = dma.vmem_to_hbm [thread:$0]  %s357, 64, %s354, %s340
        $region44: #{tpu_custom_call.1} parent=31 // pred_fallthru
          _
      $region32: #{tpu_custom_call.1} parent=5 // pred_fallthru
        _
      %p360 = scmp.le.s32.totalorder 2, %s16
      // Predicated region
      $region45: #{tpu_custom_call.1} parent=5 // pred_check
        %p361 = pneg %p360
      $region46: #{tpu_custom_call.1} parent=5 // pred_check_branch
        %363 = sbr.rel (%p361) target = $region48
      $region47: #{tpu_custom_call.1} parent=5 // pred_region
        %s364 = ssub.s32 %s16, 2
        // Predicated region
        $region49: #{tpu_custom_call.1} parent=47 // pred_check
          %p365 = pneg %p134
        $region50: #{tpu_custom_call.1} parent=47 // pred_check_branch
          %367 = sbr.rel (%p365) target = $region52
        $region51: #{tpu_custom_call.1} parent=47 // pred_region
          %s368 = sand.u32 %s119, 1
          %s369 = scalar_lea.sflag [#allocation4], %s368
          %s370 = sand.u32 %s119, 1
          %s371 = smul.addr %s370, 4
          %s372 = scalar_lea.vmem [#allocation7], %s371
          %373 = dma.done %s369, 64
        $region52: #{tpu_custom_call.1} parent=47 // pred_fallthru
          _
      $region48: #{tpu_custom_call.1} parent=5 // pred_fallthru
        _
    $region6: #{tpu_custom_call.1} parent=1 // loop_footer
      %s20 = sadd.s32 1, %s16
    $region7: #{tpu_custom_call.1} parent=1 // loop_footer_branch
      %15 = sbr.rel target = $region3
    $region8: #{tpu_custom_call.1} parent=1 // loop_exit
      _
    %374 = vsyncpa [#allocation3], 1
    %s375 = scalar_lea.sflag [#allocation3], 1
    %376 = vsyncpa %s375, 1
    %377 = vsyncpa [#allocation4], 1
    %s378 = scalar_lea.sflag [#allocation4], 1
    %379 = vsyncpa %s378, 1
    %380 = vsyncpa [#allocation5], 1
    %s381 = scalar_lea.sflag [#allocation5], 1
    %382 = vsyncpa %s381, 1

</llo_original>
